<compile_context>
chip_gen: v7x
topology: tpu7x:2x2x1
jax: 0.10.0
libtpu: 0.0.40
codegen_flags: <defaults>
</compile_context>

<pallas_src>
import functools

import jax
import jax.numpy as jnp
from jax import lax
from jax.experimental import pallas as pl
from jax.experimental.pallas import tpu as pltpu

# Module hyper-parameters (from the PyTorch script)
HIDDEN_SIZE = 4
INPUT_SIZE = 2
NUM_LAYERS = 1      # single layer; the kernel implements exactly one layer
OUTPUT_SIZE = 1

_SUBLANE = 8
_LANE = 128


def rnn_kernel(x_ref, p_ref, out_ref, *, T, I, H):
    """Many-to-one ReLU RNN + final Linear, fully inside one kernel call.

    x_ref:   (B_pad, T*I) batch-first rows; column t*I+i holds x[:, t, i].
    p_ref:   (8, 128) parameter slab (one vreg):
               rows 0..I-1,   lanes 0:H -> W_ih^T        (I, H)
               rows I..I+H-1, lanes 0:H -> W_hh^T        (H, H)
               row  I+H,      lanes 0:H -> b_ih + b_hh   (H,)
               row  7,        lanes 0:H -> w_fc[0, :]    (H,)
               row  7,        lane  H   -> b_fc[0]
    out_ref: (B_pad, 128); every lane carries the fc output (sliced outside).
    """
    Bp = x_ref.shape[0]
    slab = p_ref[...]           # exactly one (8,128) f32 vreg
    x = x_ref[...]              # (Bp, T*I)
    fc_row = slab.shape[0] - 1

    # Static slab slices, hoisted and sublane-broadcast ONCE above the loop.
    w_ih = [jnp.broadcast_to(slab[i:i + 1, 0:H], (Bp, H)) for i in range(I)]
    w_hh = [jnp.broadcast_to(slab[I + k:I + k + 1, 0:H], (Bp, H))
            for k in range(H)]
    b = jnp.broadcast_to(slab[I + H:I + H + 1, 0:H], (Bp, H))

    # Hoisted input projection: x_t @ W_ih^T + (b_ih + b_hh) for every t,
    # as I broadcast-FMAs on the VPU (no MXU push/pop, no wrapper transpose).
    x_proj = []
    for t in range(T):
        acc = b
        for i in range(I):
            acc = acc + x[:, t * I + i:t * I + i + 1] * w_ih[i]
        x_proj.append(acc)

    # Fully unrolled ReLU recurrence; h stays vreg-resident throughout.
    # TODO(synk): for T >~ 32 switch to lax.fori_loop carrying h and stream x
    # via a time-chunk grid axis ("arbitrary") instead of the full unroll.
    h = jnp.zeros((Bp, H), jnp.float32)
    for t in range(T):
        pre = x_proj[t]
        for k in range(H):
            pre = pre + h[:, k:k + 1] * w_hh[k]
        h = jnp.maximum(pre, 0.0)                      # ReLU

    # fc (H -> 1) on the last hidden state, then a lane-dense full-tile store.
    out = jnp.broadcast_to(slab[fc_row:fc_row + 1, H:H + 1], (Bp, 1))   # b_fc
    for k in range(H):
        out = out + h[:, k:k + 1] * slab[fc_row:fc_row + 1, k:k + 1]
    out_ref[...] = jnp.broadcast_to(out, out_ref.shape)


def _pack_params(params, H, I, O):
    """Pack all weights/biases into one (8,128) f32 slab (one vreg, one DMA)."""
    assert I + H + 2 <= _SUBLANE, "slab layout assumes I + H + 2 <= 8"
    assert O == 1, "slab layout packs the fc weight as a single row (O == 1)"
    assert H + O <= _LANE
    slab = jnp.zeros((_SUBLANE, _LANE), jnp.float32)
    slab = slab.at[0:I, 0:H].set(params["w_ih"].T.astype(jnp.float32))
    slab = slab.at[I:I + H, 0:H].set(params["w_hh"].T.astype(jnp.float32))
    slab = slab.at[I + H, 0:H].set(
        (params["b_ih"] + params["b_hh"]).astype(jnp.float32))
    slab = slab.at[_SUBLANE - 1, 0:H].set(params["w_fc"][0].astype(jnp.float32))
    slab = slab.at[_SUBLANE - 1, H].set(params["b_fc"][0].astype(jnp.float32))
    return slab


@jax.jit
def many_to_one_rnn(x, params):
    """x: (B, T, I) float32 (batch_first, like the PyTorch module).
    params: dict with w_ih (H,I), w_hh (H,H), b_ih (H,), b_hh (H,),
            w_fc (O,H), b_fc (O,)  -- PyTorch conventions.
    Returns (B, O) float32."""
    B, T, I = x.shape
    H = params["w_hh"].shape[0]
    O = params["w_fc"].shape[0]
    B_pad = max(_SUBLANE, -(-B // _SUBLANE) * _SUBLANE)

    slab = _pack_params(params, H, I, O)

    # Batch-first contiguous reshape (no transpose), zero-padded to the
    # 8-sublane grain; padded rows carry finite bias-driven junk, sliced off.
    x2 = x.reshape(B, T * I).astype(jnp.float32)
    x_pad = jnp.zeros((B_pad, T * I), jnp.float32).at[:B].set(x2)

    vmem = pl.BlockSpec(memory_space=pltpu.MemorySpace.VMEM)
    out_pad = pl.pallas_call(
        functools.partial(rnn_kernel, T=T, I=I, H=H),
        out_shape=jax.ShapeDtypeStruct((B_pad, _LANE), jnp.float32),
        in_specs=[vmem, vmem],
        out_specs=vmem,
    )(x_pad, slab)
    return out_pad[:B, :O]


def reference_rnn(x, params):
    """Pure-JAX reference matching torch semantics."""
    B = x.shape[0]
    H = params["w_hh"].shape[0]
    h0 = jnp.zeros((B, H), jnp.float32)

    def step(h, x_t):
        h_new = jnp.maximum(
            x_t @ params["w_ih"].T + params["b_ih"]
            + h @ params["w_hh"].T + params["b_hh"], 0.0)
        return h_new, None

    h_last, _ = lax.scan(step, h0, jnp.transpose(x, (1, 0, 2)))
    return h_last @ params["w_fc"].T + params["b_fc"]


def init_params(key, input_size, hidden_size, output_size):
    """Deterministic init matching PyTorch shapes (uniform(-1/sqrt(H), 1/sqrt(H)))."""
    ks = jax.random.split(key, 6)
    bound = 1.0 / jnp.sqrt(hidden_size)
    u = lambda k, shape: jax.random.uniform(k, shape, jnp.float32, -bound, bound)
    return {
        "w_ih": u(ks[0], (hidden_size, input_size)),
        "w_hh": u(ks[1], (hidden_size, hidden_size)),
        "b_ih": u(ks[2], (hidden_size,)),
        "b_hh": u(ks[3], (hidden_size,)),
        "w_fc": u(ks[4], (output_size, hidden_size)),
        "b_fc": u(ks[5], (output_size,)),
    }


if __name__ == "__main__":
    key = jax.random.PRNGKey(0)
    k_param, k_x = jax.random.split(key)

    B, T = 2, 8
    params = init_params(k_param, INPUT_SIZE, HIDDEN_SIZE, OUTPUT_SIZE)
    x = jax.random.normal(k_x, (B, T, INPUT_SIZE), jnp.float32)

    out = jax.block_until_ready(many_to_one_rnn(x, params))

    ref = reference_rnn(x, params)
    assert out.shape == (B, OUTPUT_SIZE)
    assert jnp.allclose(out, ref, atol=1e-5, rtol=1e-5), (out, ref)

    print("KERNEL_OK")
</pallas_src>

<mosaic_0001>
module attributes {stable_mosaic.version = 11 : i64} {
  func.func @rnn_kernel(%arg0: memref<8x16xf32, #tpu.memory_space<vmem>>, %arg1: memref<8x128xf32, #tpu.memory_space<vmem>>, %arg2: memref<8x128xf32, #tpu.memory_space<vmem>>) attributes {dimension_semantics = [], scalar_prefetch = 0 : i64, scratch_operands = 0 : i64, tpu.core_type = #tpu.core_type<tc>} {
    %c0 = arith.constant 0 : index
    %c0_0 = arith.constant 0 : index
    %0 = vector.load %arg1[%c0, %c0_0] : memref<8x128xf32, #tpu.memory_space<vmem>>, vector<8x128xf32>
    %c0_1 = arith.constant 0 : index
    %c0_2 = arith.constant 0 : index
    %1 = vector.load %arg0[%c0_1, %c0_2] : memref<8x16xf32, #tpu.memory_space<vmem>>, vector<8x16xf32>
    %2 = vector.extract_strided_slice %0 {offsets = [0, 0], sizes = [1, 4], strides = [1, 1]} : vector<8x128xf32> to vector<1x4xf32>
    %3 = vector.shape_cast %2 : vector<1x4xf32> to vector<1x4xf32>
    %4 = vector.broadcast %3 : vector<1x4xf32> to vector<8x4xf32>
    %5 = vector.extract_strided_slice %0 {offsets = [1, 0], sizes = [1, 4], strides = [1, 1]} : vector<8x128xf32> to vector<1x4xf32>
    %6 = vector.shape_cast %5 : vector<1x4xf32> to vector<1x4xf32>
    %7 = vector.broadcast %6 : vector<1x4xf32> to vector<8x4xf32>
    %8 = vector.extract_strided_slice %0 {offsets = [2, 0], sizes = [1, 4], strides = [1, 1]} : vector<8x128xf32> to vector<1x4xf32>
    %9 = vector.shape_cast %8 : vector<1x4xf32> to vector<1x4xf32>
    %10 = vector.broadcast %9 : vector<1x4xf32> to vector<8x4xf32>
    %11 = vector.extract_strided_slice %0 {offsets = [3, 0], sizes = [1, 4], strides = [1, 1]} : vector<8x128xf32> to vector<1x4xf32>
    %12 = vector.shape_cast %11 : vector<1x4xf32> to vector<1x4xf32>
    %13 = vector.broadcast %12 : vector<1x4xf32> to vector<8x4xf32>
    %14 = vector.extract_strided_slice %0 {offsets = [4, 0], sizes = [1, 4], strides = [1, 1]} : vector<8x128xf32> to vector<1x4xf32>
    %15 = vector.shape_cast %14 : vector<1x4xf32> to vector<1x4xf32>
    %16 = vector.broadcast %15 : vector<1x4xf32> to vector<8x4xf32>
    %17 = vector.extract_strided_slice %0 {offsets = [5, 0], sizes = [1, 4], strides = [1, 1]} : vector<8x128xf32> to vector<1x4xf32>
    %18 = vector.shape_cast %17 : vector<1x4xf32> to vector<1x4xf32>
    %19 = vector.broadcast %18 : vector<1x4xf32> to vector<8x4xf32>
    %20 = vector.extract_strided_slice %0 {offsets = [6, 0], sizes = [1, 4], strides = [1, 1]} : vector<8x128xf32> to vector<1x4xf32>
    %21 = vector.shape_cast %20 : vector<1x4xf32> to vector<1x4xf32>
    %22 = vector.broadcast %21 : vector<1x4xf32> to vector<8x4xf32>
    %23 = vector.extract_strided_slice %1 {offsets = [0, 0], sizes = [8, 1], strides = [1, 1]} : vector<8x16xf32> to vector<8x1xf32>
    %24 = vector.broadcast %23 : vector<8x1xf32> to vector<8x4xf32>
    %25 = arith.mulf %24, %4 : vector<8x4xf32>
    %26 = arith.addf %22, %25 : vector<8x4xf32>
    %27 = vector.extract_strided_slice %1 {offsets = [0, 1], sizes = [8, 1], strides = [1, 1]} : vector<8x16xf32> to vector<8x1xf32>
    %28 = vector.broadcast %27 : vector<8x1xf32> to vector<8x4xf32>
    %29 = arith.mulf %28, %7 : vector<8x4xf32>
    %30 = arith.addf %26, %29 : vector<8x4xf32>
    %31 = vector.extract_strided_slice %1 {offsets = [0, 2], sizes = [8, 1], strides = [1, 1]} : vector<8x16xf32> to vector<8x1xf32>
    %32 = vector.broadcast %31 : vector<8x1xf32> to vector<8x4xf32>
    %33 = arith.mulf %32, %4 : vector<8x4xf32>
    %34 = arith.addf %22, %33 : vector<8x4xf32>
    %35 = vector.extract_strided_slice %1 {offsets = [0, 3], sizes = [8, 1], strides = [1, 1]} : vector<8x16xf32> to vector<8x1xf32>
    %36 = vector.broadcast %35 : vector<8x1xf32> to vector<8x4xf32>
    %37 = arith.mulf %36, %7 : vector<8x4xf32>
    %38 = arith.addf %34, %37 : vector<8x4xf32>
    %39 = vector.extract_strided_slice %1 {offsets = [0, 4], sizes = [8, 1], strides = [1, 1]} : vector<8x16xf32> to vector<8x1xf32>
    %40 = vector.broadcast %39 : vector<8x1xf32> to vector<8x4xf32>
    %41 = arith.mulf %40, %4 : vector<8x4xf32>
    %42 = arith.addf %22, %41 : vector<8x4xf32>
    %43 = vector.extract_strided_slice %1 {offsets = [0, 5], sizes = [8, 1], strides = [1, 1]} : vector<8x16xf32> to vector<8x1xf32>
    %44 = vector.broadcast %43 : vector<8x1xf32> to vector<8x4xf32>
    %45 = arith.mulf %44, %7 : vector<8x4xf32>
    %46 = arith.addf %42, %45 : vector<8x4xf32>
    %47 = vector.extract_strided_slice %1 {offsets = [0, 6], sizes = [8, 1], strides = [1, 1]} : vector<8x16xf32> to vector<8x1xf32>
    %48 = vector.broadcast %47 : vector<8x1xf32> to vector<8x4xf32>
    %49 = arith.mulf %48, %4 : vector<8x4xf32>
    %50 = arith.addf %22, %49 : vector<8x4xf32>
    %51 = vector.extract_strided_slice %1 {offsets = [0, 7], sizes = [8, 1], strides = [1, 1]} : vector<8x16xf32> to vector<8x1xf32>
    %52 = vector.broadcast %51 : vector<8x1xf32> to vector<8x4xf32>
    %53 = arith.mulf %52, %7 : vector<8x4xf32>
    %54 = arith.addf %50, %53 : vector<8x4xf32>
    %55 = vector.extract_strided_slice %1 {offsets = [0, 8], sizes = [8, 1], strides = [1, 1]} : vector<8x16xf32> to vector<8x1xf32>
    %56 = vector.broadcast %55 : vector<8x1xf32> to vector<8x4xf32>
    %57 = arith.mulf %56, %4 : vector<8x4xf32>
    %58 = arith.addf %22, %57 : vector<8x4xf32>
    %59 = vector.extract_strided_slice %1 {offsets = [0, 9], sizes = [8, 1], strides = [1, 1]} : vector<8x16xf32> to vector<8x1xf32>
    %60 = vector.broadcast %59 : vector<8x1xf32> to vector<8x4xf32>
    %61 = arith.mulf %60, %7 : vector<8x4xf32>
    %62 = arith.addf %58, %61 : vector<8x4xf32>
    %63 = vector.extract_strided_slice %1 {offsets = [0, 10], sizes = [8, 1], strides = [1, 1]} : vector<8x16xf32> to vector<8x1xf32>
    %64 = vector.broadcast %63 : vector<8x1xf32> to vector<8x4xf32>
    %65 = arith.mulf %64, %4 : vector<8x4xf32>
    %66 = arith.addf %22, %65 : vector<8x4xf32>
    %67 = vector.extract_strided_slice %1 {offsets = [0, 11], sizes = [8, 1], strides = [1, 1]} : vector<8x16xf32> to vector<8x1xf32>
    %68 = vector.broadcast %67 : vector<8x1xf32> to vector<8x4xf32>
    %69 = arith.mulf %68, %7 : vector<8x4xf32>
    %70 = arith.addf %66, %69 : vector<8x4xf32>
    %71 = vector.extract_strided_slice %1 {offsets = [0, 12], sizes = [8, 1], strides = [1, 1]} : vector<8x16xf32> to vector<8x1xf32>
    %72 = vector.broadcast %71 : vector<8x1xf32> to vector<8x4xf32>
    %73 = arith.mulf %72, %4 : vector<8x4xf32>
    %74 = arith.addf %22, %73 : vector<8x4xf32>
    %75 = vector.extract_strided_slice %1 {offsets = [0, 13], sizes = [8, 1], strides = [1, 1]} : vector<8x16xf32> to vector<8x1xf32>
    %76 = vector.broadcast %75 : vector<8x1xf32> to vector<8x4xf32>
    %77 = arith.mulf %76, %7 : vector<8x4xf32>
    %78 = arith.addf %74, %77 : vector<8x4xf32>
    %79 = vector.extract_strided_slice %1 {offsets = [0, 14], sizes = [8, 1], strides = [1, 1]} : vector<8x16xf32> to vector<8x1xf32>
    %80 = vector.broadcast %79 : vector<8x1xf32> to vector<8x4xf32>
    %81 = arith.mulf %80, %4 : vector<8x4xf32>
    %82 = arith.addf %22, %81 : vector<8x4xf32>
    %83 = vector.extract_strided_slice %1 {offsets = [0, 15], sizes = [8, 1], strides = [1, 1]} : vector<8x16xf32> to vector<8x1xf32>
    %84 = vector.broadcast %83 : vector<8x1xf32> to vector<8x4xf32>
    %85 = arith.mulf %84, %7 : vector<8x4xf32>
    %86 = arith.addf %82, %85 : vector<8x4xf32>
    %cst = arith.constant 0.000000e+00 : f32
    %87 = vector.broadcast %cst : f32 to vector<8x4xf32>
    %88 = vector.extract_strided_slice %87 {offsets = [0, 0], sizes = [8, 1], strides = [1, 1]} : vector<8x4xf32> to vector<8x1xf32>
    %89 = vector.broadcast %88 : vector<8x1xf32> to vector<8x4xf32>
    %90 = arith.mulf %89, %10 : vector<8x4xf32>
    %91 = arith.addf %30, %90 : vector<8x4xf32>
    %92 = vector.extract_strided_slice %87 {offsets = [0, 1], sizes = [8, 1], strides = [1, 1]} : vector<8x4xf32> to vector<8x1xf32>
    %93 = vector.broadcast %92 : vector<8x1xf32> to vector<8x4xf32>
    %94 = arith.mulf %93, %13 : vector<8x4xf32>
    %95 = arith.addf %91, %94 : vector<8x4xf32>
    %96 = vector.extract_strided_slice %87 {offsets = [0, 2], sizes = [8, 1], strides = [1, 1]} : vector<8x4xf32> to vector<8x1xf32>
    %97 = vector.broadcast %96 : vector<8x1xf32> to vector<8x4xf32>
    %98 = arith.mulf %97, %16 : vector<8x4xf32>
    %99 = arith.addf %95, %98 : vector<8x4xf32>
    %100 = vector.extract_strided_slice %87 {offsets = [0, 3], sizes = [8, 1], strides = [1, 1]} : vector<8x4xf32> to vector<8x1xf32>
    %101 = vector.broadcast %100 : vector<8x1xf32> to vector<8x4xf32>
    %102 = arith.mulf %101, %19 : vector<8x4xf32>
    %103 = arith.addf %99, %102 : vector<8x4xf32>
    %cst_3 = arith.constant 0.000000e+00 : f32
    %104 = vector.broadcast %cst_3 : f32 to vector<8x4xf32>
    %105 = arith.maximumf %103, %104 : vector<8x4xf32>
    %106 = vector.extract_strided_slice %105 {offsets = [0, 0], sizes = [8, 1], strides = [1, 1]} : vector<8x4xf32> to vector<8x1xf32>
    %107 = vector.broadcast %106 : vector<8x1xf32> to vector<8x4xf32>
    %108 = arith.mulf %107, %10 : vector<8x4xf32>
    %109 = arith.addf %38, %108 : vector<8x4xf32>
    %110 = vector.extract_strided_slice %105 {offsets = [0, 1], sizes = [8, 1], strides = [1, 1]} : vector<8x4xf32> to vector<8x1xf32>
    %111 = vector.broadcast %110 : vector<8x1xf32> to vector<8x4xf32>
    %112 = arith.mulf %111, %13 : vector<8x4xf32>
    %113 = arith.addf %109, %112 : vector<8x4xf32>
    %114 = vector.extract_strided_slice %105 {offsets = [0, 2], sizes = [8, 1], strides = [1, 1]} : vector<8x4xf32> to vector<8x1xf32>
    %115 = vector.broadcast %114 : vector<8x1xf32> to vector<8x4xf32>
    %116 = arith.mulf %115, %16 : vector<8x4xf32>
    %117 = arith.addf %113, %116 : vector<8x4xf32>
    %118 = vector.extract_strided_slice %105 {offsets = [0, 3], sizes = [8, 1], strides = [1, 1]} : vector<8x4xf32> to vector<8x1xf32>
    %119 = vector.broadcast %118 : vector<8x1xf32> to vector<8x4xf32>
    %120 = arith.mulf %119, %19 : vector<8x4xf32>
    %121 = arith.addf %117, %120 : vector<8x4xf32>
    %cst_4 = arith.constant 0.000000e+00 : f32
    %122 = vector.broadcast %cst_4 : f32 to vector<8x4xf32>
    %123 = arith.maximumf %121, %122 : vector<8x4xf32>
    %124 = vector.extract_strided_slice %123 {offsets = [0, 0], sizes = [8, 1], strides = [1, 1]} : vector<8x4xf32> to vector<8x1xf32>
    %125 = vector.broadcast %124 : vector<8x1xf32> to vector<8x4xf32>
    %126 = arith.mulf %125, %10 : vector<8x4xf32>
    %127 = arith.addf %46, %126 : vector<8x4xf32>
    %128 = vector.extract_strided_slice %123 {offsets = [0, 1], sizes = [8, 1], strides = [1, 1]} : vector<8x4xf32> to vector<8x1xf32>
    %129 = vector.broadcast %128 : vector<8x1xf32> to vector<8x4xf32>
    %130 = arith.mulf %129, %13 : vector<8x4xf32>
    %131 = arith.addf %127, %130 : vector<8x4xf32>
    %132 = vector.extract_strided_slice %123 {offsets = [0, 2], sizes = [8, 1], strides = [1, 1]} : vector<8x4xf32> to vector<8x1xf32>
    %133 = vector.broadcast %132 : vector<8x1xf32> to vector<8x4xf32>
    %134 = arith.mulf %133, %16 : vector<8x4xf32>
    %135 = arith.addf %131, %134 : vector<8x4xf32>
    %136 = vector.extract_strided_slice %123 {offsets = [0, 3], sizes = [8, 1], strides = [1, 1]} : vector<8x4xf32> to vector<8x1xf32>
    %137 = vector.broadcast %136 : vector<8x1xf32> to vector<8x4xf32>
    %138 = arith.mulf %137, %19 : vector<8x4xf32>
    %139 = arith.addf %135, %138 : vector<8x4xf32>
    %cst_5 = arith.constant 0.000000e+00 : f32
    %140 = vector.broadcast %cst_5 : f32 to vector<8x4xf32>
    %141 = arith.maximumf %139, %140 : vector<8x4xf32>
    %142 = vector.extract_strided_slice %141 {offsets = [0, 0], sizes = [8, 1], strides = [1, 1]} : vector<8x4xf32> to vector<8x1xf32>
    %143 = vector.broadcast %142 : vector<8x1xf32> to vector<8x4xf32>
    %144 = arith.mulf %143, %10 : vector<8x4xf32>
    %145 = arith.addf %54, %144 : vector<8x4xf32>
    %146 = vector.extract_strided_slice %141 {offsets = [0, 1], sizes = [8, 1], strides = [1, 1]} : vector<8x4xf32> to vector<8x1xf32>
    %147 = vector.broadcast %146 : vector<8x1xf32> to vector<8x4xf32>
    %148 = arith.mulf %147, %13 : vector<8x4xf32>
    %149 = arith.addf %145, %148 : vector<8x4xf32>
    %150 = vector.extract_strided_slice %141 {offsets = [0, 2], sizes = [8, 1], strides = [1, 1]} : vector<8x4xf32> to vector<8x1xf32>
    %151 = vector.broadcast %150 : vector<8x1xf32> to vector<8x4xf32>
    %152 = arith.mulf %151, %16 : vector<8x4xf32>
    %153 = arith.addf %149, %152 : vector<8x4xf32>
    %154 = vector.extract_strided_slice %141 {offsets = [0, 3], sizes = [8, 1], strides = [1, 1]} : vector<8x4xf32> to vector<8x1xf32>
    %155 = vector.broadcast %154 : vector<8x1xf32> to vector<8x4xf32>
    %156 = arith.mulf %155, %19 : vector<8x4xf32>
    %157 = arith.addf %153, %156 : vector<8x4xf32>
    %cst_6 = arith.constant 0.000000e+00 : f32
    %158 = vector.broadcast %cst_6 : f32 to vector<8x4xf32>
    %159 = arith.maximumf %157, %158 : vector<8x4xf32>
    %160 = vector.extract_strided_slice %159 {offsets = [0, 0], sizes = [8, 1], strides = [1, 1]} : vector<8x4xf32> to vector<8x1xf32>
    %161 = vector.broadcast %160 : vector<8x1xf32> to vector<8x4xf32>
    %162 = arith.mulf %161, %10 : vector<8x4xf32>
    %163 = arith.addf %62, %162 : vector<8x4xf32>
    %164 = vector.extract_strided_slice %159 {offsets = [0, 1], sizes = [8, 1], strides = [1, 1]} : vector<8x4xf32> to vector<8x1xf32>
    %165 = vector.broadcast %164 : vector<8x1xf32> to vector<8x4xf32>
    %166 = arith.mulf %165, %13 : vector<8x4xf32>
    %167 = arith.addf %163, %166 : vector<8x4xf32>
    %168 = vector.extract_strided_slice %159 {offsets = [0, 2], sizes = [8, 1], strides = [1, 1]} : vector<8x4xf32> to vector<8x1xf32>
    %169 = vector.broadcast %168 : vector<8x1xf32> to vector<8x4xf32>
    %170 = arith.mulf %169, %16 : vector<8x4xf32>
    %171 = arith.addf %167, %170 : vector<8x4xf32>
    %172 = vector.extract_strided_slice %159 {offsets = [0, 3], sizes = [8, 1], strides = [1, 1]} : vector<8x4xf32> to vector<8x1xf32>
    %173 = vector.broadcast %172 : vector<8x1xf32> to vector<8x4xf32>
    %174 = arith.mulf %173, %19 : vector<8x4xf32>
    %175 = arith.addf %171, %174 : vector<8x4xf32>
    %cst_7 = arith.constant 0.000000e+00 : f32
    %176 = vector.broadcast %cst_7 : f32 to vector<8x4xf32>
    %177 = arith.maximumf %175, %176 : vector<8x4xf32>
    %178 = vector.extract_strided_slice %177 {offsets = [0, 0], sizes = [8, 1], strides = [1, 1]} : vector<8x4xf32> to vector<8x1xf32>
    %179 = vector.broadcast %178 : vector<8x1xf32> to vector<8x4xf32>
    %180 = arith.mulf %179, %10 : vector<8x4xf32>
    %181 = arith.addf %70, %180 : vector<8x4xf32>
    %182 = vector.extract_strided_slice %177 {offsets = [0, 1], sizes = [8, 1], strides = [1, 1]} : vector<8x4xf32> to vector<8x1xf32>
    %183 = vector.broadcast %182 : vector<8x1xf32> to vector<8x4xf32>
    %184 = arith.mulf %183, %13 : vector<8x4xf32>
    %185 = arith.addf %181, %184 : vector<8x4xf32>
    %186 = vector.extract_strided_slice %177 {offsets = [0, 2], sizes = [8, 1], strides = [1, 1]} : vector<8x4xf32> to vector<8x1xf32>
    %187 = vector.broadcast %186 : vector<8x1xf32> to vector<8x4xf32>
    %188 = arith.mulf %187, %16 : vector<8x4xf32>
    %189 = arith.addf %185, %188 : vector<8x4xf32>
    %190 = vector.extract_strided_slice %177 {offsets = [0, 3], sizes = [8, 1], strides = [1, 1]} : vector<8x4xf32> to vector<8x1xf32>
    %191 = vector.broadcast %190 : vector<8x1xf32> to vector<8x4xf32>
    %192 = arith.mulf %191, %19 : vector<8x4xf32>
    %193 = arith.addf %189, %192 : vector<8x4xf32>
    %cst_8 = arith.constant 0.000000e+00 : f32
    %194 = vector.broadcast %cst_8 : f32 to vector<8x4xf32>
    %195 = arith.maximumf %193, %194 : vector<8x4xf32>
    %196 = vector.extract_strided_slice %195 {offsets = [0, 0], sizes = [8, 1], strides = [1, 1]} : vector<8x4xf32> to vector<8x1xf32>
    %197 = vector.broadcast %196 : vector<8x1xf32> to vector<8x4xf32>
    %198 = arith.mulf %197, %10 : vector<8x4xf32>
    %199 = arith.addf %78, %198 : vector<8x4xf32>
    %200 = vector.extract_strided_slice %195 {offsets = [0, 1], sizes = [8, 1], strides = [1, 1]} : vector<8x4xf32> to vector<8x1xf32>
    %201 = vector.broadcast %200 : vector<8x1xf32> to vector<8x4xf32>
    %202 = arith.mulf %201, %13 : vector<8x4xf32>
    %203 = arith.addf %199, %202 : vector<8x4xf32>
    %204 = vector.extract_strided_slice %195 {offsets = [0, 2], sizes = [8, 1], strides = [1, 1]} : vector<8x4xf32> to vector<8x1xf32>
    %205 = vector.broadcast %204 : vector<8x1xf32> to vector<8x4xf32>
    %206 = arith.mulf %205, %16 : vector<8x4xf32>
    %207 = arith.addf %203, %206 : vector<8x4xf32>
    %208 = vector.extract_strided_slice %195 {offsets = [0, 3], sizes = [8, 1], strides = [1, 1]} : vector<8x4xf32> to vector<8x1xf32>
    %209 = vector.broadcast %208 : vector<8x1xf32> to vector<8x4xf32>
    %210 = arith.mulf %209, %19 : vector<8x4xf32>
    %211 = arith.addf %207, %210 : vector<8x4xf32>
    %cst_9 = arith.constant 0.000000e+00 : f32
    %212 = vector.broadcast %cst_9 : f32 to vector<8x4xf32>
    %213 = arith.maximumf %211, %212 : vector<8x4xf32>
    %214 = vector.extract_strided_slice %213 {offsets = [0, 0], sizes = [8, 1], strides = [1, 1]} : vector<8x4xf32> to vector<8x1xf32>
    %215 = vector.broadcast %214 : vector<8x1xf32> to vector<8x4xf32>
    %216 = arith.mulf %215, %10 : vector<8x4xf32>
    %217 = arith.addf %86, %216 : vector<8x4xf32>
    %218 = vector.extract_strided_slice %213 {offsets = [0, 1], sizes = [8, 1], strides = [1, 1]} : vector<8x4xf32> to vector<8x1xf32>
    %219 = vector.broadcast %218 : vector<8x1xf32> to vector<8x4xf32>
    %220 = arith.mulf %219, %13 : vector<8x4xf32>
    %221 = arith.addf %217, %220 : vector<8x4xf32>
    %222 = vector.extract_strided_slice %213 {offsets = [0, 2], sizes = [8, 1], strides = [1, 1]} : vector<8x4xf32> to vector<8x1xf32>
    %223 = vector.broadcast %222 : vector<8x1xf32> to vector<8x4xf32>
    %224 = arith.mulf %223, %16 : vector<8x4xf32>
    %225 = arith.addf %221, %224 : vector<8x4xf32>
    %226 = vector.extract_strided_slice %213 {offsets = [0, 3], sizes = [8, 1], strides = [1, 1]} : vector<8x4xf32> to vector<8x1xf32>
    %227 = vector.broadcast %226 : vector<8x1xf32> to vector<8x4xf32>
    %228 = arith.mulf %227, %19 : vector<8x4xf32>
    %229 = arith.addf %225, %228 : vector<8x4xf32>
    %cst_10 = arith.constant 0.000000e+00 : f32
    %230 = vector.broadcast %cst_10 : f32 to vector<8x4xf32>
    %231 = arith.maximumf %229, %230 : vector<8x4xf32>
    %232 = vector.extract_strided_slice %0 {offsets = [7, 4], sizes = [1, 1], strides = [1, 1]} : vector<8x128xf32> to vector<1x1xf32>
    %233 = vector.shape_cast %232 : vector<1x1xf32> to vector<1x1xf32>
    %234 = vector.broadcast %233 : vector<1x1xf32> to vector<8x1xf32>
    %235 = vector.extract_strided_slice %231 {offsets = [0, 0], sizes = [8, 1], strides = [1, 1]} : vector<8x4xf32> to vector<8x1xf32>
    %236 = vector.extract_strided_slice %0 {offsets = [7, 0], sizes = [1, 1], strides = [1, 1]} : vector<8x128xf32> to vector<1x1xf32>
    %237 = vector.broadcast %236 : vector<1x1xf32> to vector<8x1xf32>
    %238 = arith.mulf %235, %237 : vector<8x1xf32>
    %239 = arith.addf %234, %238 : vector<8x1xf32>
    %240 = vector.extract_strided_slice %231 {offsets = [0, 1], sizes = [8, 1], strides = [1, 1]} : vector<8x4xf32> to vector<8x1xf32>
    %241 = vector.extract_strided_slice %0 {offsets = [7, 1], sizes = [1, 1], strides = [1, 1]} : vector<8x128xf32> to vector<1x1xf32>
    %242 = vector.broadcast %241 : vector<1x1xf32> to vector<8x1xf32>
    %243 = arith.mulf %240, %242 : vector<8x1xf32>
    %244 = arith.addf %239, %243 : vector<8x1xf32>
    %245 = vector.extract_strided_slice %231 {offsets = [0, 2], sizes = [8, 1], strides = [1, 1]} : vector<8x4xf32> to vector<8x1xf32>
    %246 = vector.extract_strided_slice %0 {offsets = [7, 2], sizes = [1, 1], strides = [1, 1]} : vector<8x128xf32> to vector<1x1xf32>
    %247 = vector.broadcast %246 : vector<1x1xf32> to vector<8x1xf32>
    %248 = arith.mulf %245, %247 : vector<8x1xf32>
    %249 = arith.addf %244, %248 : vector<8x1xf32>
    %250 = vector.extract_strided_slice %231 {offsets = [0, 3], sizes = [8, 1], strides = [1, 1]} : vector<8x4xf32> to vector<8x1xf32>
    %251 = vector.extract_strided_slice %0 {offsets = [7, 3], sizes = [1, 1], strides = [1, 1]} : vector<8x128xf32> to vector<1x1xf32>
    %252 = vector.broadcast %251 : vector<1x1xf32> to vector<8x1xf32>
    %253 = arith.mulf %250, %252 : vector<8x1xf32>
    %254 = arith.addf %249, %253 : vector<8x1xf32>
    %255 = vector.shape_cast %254 : vector<8x1xf32> to vector<8x1xf32>
    %256 = vector.broadcast %255 : vector<8x1xf32> to vector<8x128xf32>
    %c0_11 = arith.constant 0 : index
    %c0_12 = arith.constant 0 : index
    %257 = vector.load %arg2[%c0_11, %c0_12] : memref<8x128xf32, #tpu.memory_space<vmem>>, vector<8x128xf32>
    tpu.vector_store %arg2[%c0_11, %c0_12], %256 {strides = array<i32>} : memref<8x128xf32, #tpu.memory_space<vmem>>, vector<8x128xf32>,
    return
  }
}

</mosaic_0001>

<llo_original>
// kernel: many_to_one_rnn.1
$region0: #{many_to_one_rnn.1}
  #allocation0 [shape = 'u32[]', space=smem, size = 0x4, offset = 0x4, fixed_abs, tag = 'smem constant byte address 0x4 - core index']
  #allocation1 [shape = 'u32[144,128]{1,0:T(1,128)}', space=vmem, size = 0x12000, scoped, tag = 'internal scratch']
  %s0 = inlined_call_operand.vmem [shape: f32[8,16], index: 0, kind: input, shape index: {}]
  %s1 = inlined_call_operand.vmem [shape: f32[8,128], index: 1, kind: input, shape index: {}]
  %s2 = inlined_call_operand.vmem [shape: f32[8,128], index: 2, kind: output, shape index: {}]
  %s3 = sld [smem:[#allocation0]]
  $region18: #{many_to_one_rnn.1} parent=0
    _
  %s5 = ssub.s32 1, %s3
  %s6 = scalar_select 0, %s5, %s3
  // Predicated region
  $region2: #{many_to_one_rnn.1} parent=0 // pred_check
    _
  $region3: #{many_to_one_rnn.1} parent=0 // pred_check_branch
    %8 = sbr.rel (0) target = $region5
  $region4: #{many_to_one_rnn.1} parent=0 // pred_region
    _
  $region5: #{many_to_one_rnn.1} parent=0 // pred_fallthru
    _
  // Predicated region
  $region6: #{many_to_one_rnn.1} parent=0 // pred_check
    _
  $region7: #{many_to_one_rnn.1} parent=0 // pred_check_branch
    %10 = sbr.rel (0) target = $region9
  $region8: #{many_to_one_rnn.1} parent=0 // pred_region
    _
  $region9: #{many_to_one_rnn.1} parent=0 // pred_fallthru
    _
  %v11 = vld [vmem:[%s1] sm:$0xff]
  %v12 = vld [vmem:[%s0] sm:$0xff]
  %v13 = vlaneseq
  %v14 = vshrl.u32 %v13, 7
  %v15 = vsub.s32 0, %v14
  %v16 = vrot.slane %v11, %v15
  %v17 = vlaneseq
  %v18 = vshrl.u32 %v17, 7
  %v19 = vsub.s32 1, %v18
  %v20 = vrot.slane %v11, %v19
  %v21 = vlaneseq
  %v22 = vshrl.u32 %v21, 7
  %v23 = vsub.s32 2, %v22
  %v24 = vrot.slane %v11, %v23
  %v25 = vlaneseq
  %v26 = vshrl.u32 %v25, 7
  %v27 = vsub.s32 3, %v26
  %v28 = vrot.slane %v11, %v27
  %v29 = vlaneseq
  %v30 = vshrl.u32 %v29, 7
  %v31 = vsub.s32 4, %v30
  %v32 = vrot.slane %v11, %v31
  %v33 = vlaneseq
  %v34 = vshrl.u32 %v33, 7
  %v35 = vsub.s32 5, %v34
  %v36 = vrot.slane %v11, %v35
  %v37 = vlaneseq
  %v38 = vshrl.u32 %v37, 7
  %v39 = vsub.s32 6, %v38
  %v40 = vrot.slane %v11, %v39
  %42 = vset.pattern.permute.xlu0 0
  %43 = vperm.xlu0 %42, %v12
  %v44 = vpop.permute.xlu0 %43
  %v46 = vmul.f32 %v44, %v16
  %v47 = vadd.f32 %v40, %v46
  %48 = vset.pattern.permute.xlu0 1
  %49 = vperm.xlu0 %48, %v12
  %v50 = vpop.permute.xlu0 %49
  %v52 = vmul.f32 %v50, %v20
  %v53 = vadd.f32 %v47, %v52
  %54 = vset.pattern.permute.xlu0 2
  %55 = vperm.xlu0 %54, %v12
  %v56 = vpop.permute.xlu0 %55
  %v58 = vmul.f32 %v56, %v16
  %v59 = vadd.f32 %v40, %v58
  %60 = vset.pattern.permute.xlu0 3
  %61 = vperm.xlu0 %60, %v12
  %v62 = vpop.permute.xlu0 %61
  %v64 = vmul.f32 %v62, %v20
  %v65 = vadd.f32 %v59, %v64
  %66 = vset.pattern.permute.xlu0 4
  %67 = vperm.xlu0 %66, %v12
  %v68 = vpop.permute.xlu0 %67
  %v70 = vmul.f32 %v68, %v16
  %v71 = vadd.f32 %v40, %v70
  %72 = vset.pattern.permute.xlu0 5
  %73 = vperm.xlu0 %72, %v12
  %v74 = vpop.permute.xlu0 %73
  %v76 = vmul.f32 %v74, %v20
  %v77 = vadd.f32 %v71, %v76
  %78 = vset.pattern.permute.xlu0 6
  %79 = vperm.xlu0 %78, %v12
  %v80 = vpop.permute.xlu0 %79
  %v82 = vmul.f32 %v80, %v16
  %v83 = vadd.f32 %v40, %v82
  %84 = vset.pattern.permute.xlu0 7
  %85 = vperm.xlu0 %84, %v12
  %v86 = vpop.permute.xlu0 %85
  %v88 = vmul.f32 %v86, %v20
  %v89 = vadd.f32 %v83, %v88
  %90 = vset.pattern.permute.xlu0 8
  %91 = vperm.xlu0 %90, %v12
  %v92 = vpop.permute.xlu0 %91
  %v94 = vmul.f32 %v92, %v16
  %v95 = vadd.f32 %v40, %v94
  %96 = vset.pattern.permute.xlu0 9
  %97 = vperm.xlu0 %96, %v12
  %v98 = vpop.permute.xlu0 %97
  %v100 = vmul.f32 %v98, %v20
  %v101 = vadd.f32 %v95, %v100
  %102 = vset.pattern.permute.xlu0 10
  %103 = vperm.xlu0 %102, %v12
  %v104 = vpop.permute.xlu0 %103
  %v106 = vmul.f32 %v104, %v16
  %v107 = vadd.f32 %v40, %v106
  %108 = vset.pattern.permute.xlu0 11
  %109 = vperm.xlu0 %108, %v12
  %v110 = vpop.permute.xlu0 %109
  %v112 = vmul.f32 %v110, %v20
  %v113 = vadd.f32 %v107, %v112
  %114 = vset.pattern.permute.xlu0 12
  %115 = vperm.xlu0 %114, %v12
  %v116 = vpop.permute.xlu0 %115
  %v118 = vmul.f32 %v116, %v16
  %v119 = vadd.f32 %v40, %v118
  %120 = vset.pattern.permute.xlu0 13
  %121 = vperm.xlu0 %120, %v12
  %v122 = vpop.permute.xlu0 %121
  %v124 = vmul.f32 %v122, %v20
  %v125 = vadd.f32 %v119, %v124
  %126 = vset.pattern.permute.xlu0 14
  %127 = vperm.xlu0 %126, %v12
  %v128 = vpop.permute.xlu0 %127
  %v130 = vmul.f32 %v128, %v16
  %v131 = vadd.f32 %v40, %v130
  %132 = vset.pattern.permute.xlu0 15
  %133 = vperm.xlu0 %132, %v12
  %v134 = vpop.permute.xlu0 %133
  %v136 = vmul.f32 %v134, %v20
  %v137 = vadd.f32 %v131, %v136
  %v138 = vmul.f32 %v24, 0.0
  %v139 = vadd.f32 %v53, %v138
  %v140 = vmul.f32 %v28, 0.0
  %v141 = vadd.f32 %v139, %v140
  %v142 = vmul.f32 %v32, 0.0
  %v143 = vadd.f32 %v141, %v142
  %v144 = vmul.f32 %v36, 0.0
  %v145 = vadd.f32 %v143, %v144
  %v146 = vmax.f32 %v145, 0.0
  %148 = vset.pattern.permute.xlu0 0
  %149 = vperm.xlu0 %148, %v146
  %v150 = vpop.permute.xlu0 %149
  %v152 = vmul.f32 %v150, %v24
  %v153 = vadd.f32 %v65, %v152
  %154 = vset.pattern.permute.xlu0 1
  %155 = vperm.xlu0 %154, %v146
  %v156 = vpop.permute.xlu0 %155
  %v158 = vmul.f32 %v156, %v28
  %v159 = vadd.f32 %v153, %v158
  %160 = vset.pattern.permute.xlu0 2
  %161 = vperm.xlu0 %160, %v146
  %v162 = vpop.permute.xlu0 %161
  %v164 = vmul.f32 %v162, %v32
  %v165 = vadd.f32 %v159, %v164
  %166 = vset.pattern.permute.xlu0 3
  %167 = vperm.xlu0 %166, %v146
  %v168 = vpop.permute.xlu0 %167
  %v170 = vmul.f32 %v168, %v36
  %v171 = vadd.f32 %v165, %v170
  %v172 = vmax.f32 %v171, 0.0
  %174 = vset.pattern.permute.xlu0 0
  %175 = vperm.xlu0 %174, %v172
  %v176 = vpop.permute.xlu0 %175
  %v178 = vmul.f32 %v176, %v24
  %v179 = vadd.f32 %v77, %v178
  %180 = vset.pattern.permute.xlu0 1
  %181 = vperm.xlu0 %180, %v172
  %v182 = vpop.permute.xlu0 %181
  %v184 = vmul.f32 %v182, %v28
  %v185 = vadd.f32 %v179, %v184
  %186 = vset.pattern.permute.xlu0 2
  %187 = vperm.xlu0 %186, %v172
  %v188 = vpop.permute.xlu0 %187
  %v190 = vmul.f32 %v188, %v32
  %v191 = vadd.f32 %v185, %v190
  %192 = vset.pattern.permute.xlu0 3
  %193 = vperm.xlu0 %192, %v172
  %v194 = vpop.permute.xlu0 %193
  %v196 = vmul.f32 %v194, %v36
  %v197 = vadd.f32 %v191, %v196
  %v198 = vmax.f32 %v197, 0.0
  %200 = vset.pattern.permute.xlu0 0
  %201 = vperm.xlu0 %200, %v198
  %v202 = vpop.permute.xlu0 %201
  %v204 = vmul.f32 %v202, %v24
  %v205 = vadd.f32 %v89, %v204
  %206 = vset.pattern.permute.xlu0 1
  %207 = vperm.xlu0 %206, %v198
  %v208 = vpop.permute.xlu0 %207
  %v210 = vmul.f32 %v208, %v28
  %v211 = vadd.f32 %v205, %v210
  %212 = vset.pattern.permute.xlu0 2
  %213 = vperm.xlu0 %212, %v198
  %v214 = vpop.permute.xlu0 %213
  %v216 = vmul.f32 %v214, %v32
  %v217 = vadd.f32 %v211, %v216
  %218 = vset.pattern.permute.xlu0 3
  %219 = vperm.xlu0 %218, %v198
  %v220 = vpop.permute.xlu0 %219
  %v222 = vmul.f32 %v220, %v36
  %v223 = vadd.f32 %v217, %v222
  %v224 = vmax.f32 %v223, 0.0
  %226 = vset.pattern.permute.xlu0 0
  %227 = vperm.xlu0 %226, %v224
  %v228 = vpop.permute.xlu0 %227
  %v230 = vmul.f32 %v228, %v24
  %v231 = vadd.f32 %v101, %v230
  %232 = vset.pattern.permute.xlu0 1
  %233 = vperm.xlu0 %232, %v224
  %v234 = vpop.permute.xlu0 %233
  %v236 = vmul.f32 %v234, %v28
  %v237 = vadd.f32 %v231, %v236
  %238 = vset.pattern.permute.xlu0 2
  %239 = vperm.xlu0 %238, %v224
  %v240 = vpop.permute.xlu0 %239
  %v242 = vmul.f32 %v240, %v32
  %v243 = vadd.f32 %v237, %v242
  %244 = vset.pattern.permute.xlu0 3
  %245 = vperm.xlu0 %244, %v224
  %v246 = vpop.permute.xlu0 %245
  %v248 = vmul.f32 %v246, %v36
  %v249 = vadd.f32 %v243, %v248
  %v250 = vmax.f32 %v249, 0.0
  %252 = vset.pattern.permute.xlu0 0
  %253 = vperm.xlu0 %252, %v250
  %v254 = vpop.permute.xlu0 %253
  %v256 = vmul.f32 %v254, %v24
  %v257 = vadd.f32 %v113, %v256
  %258 = vset.pattern.permute.xlu0 1
  %259 = vperm.xlu0 %258, %v250
  %v260 = vpop.permute.xlu0 %259
  %v262 = vmul.f32 %v260, %v28
  %v263 = vadd.f32 %v257, %v262
  %264 = vset.pattern.permute.xlu0 2
  %265 = vperm.xlu0 %264, %v250
  %v266 = vpop.permute.xlu0 %265
  %v268 = vmul.f32 %v266, %v32
  %v269 = vadd.f32 %v263, %v268
  %270 = vset.pattern.permute.xlu0 3
  %271 = vperm.xlu0 %270, %v250
  %v272 = vpop.permute.xlu0 %271
  %v274 = vmul.f32 %v272, %v36
  %v275 = vadd.f32 %v269, %v274
  %v276 = vmax.f32 %v275, 0.0
  %278 = vset.pattern.permute.xlu0 0
  %279 = vperm.xlu0 %278, %v276
  %v280 = vpop.permute.xlu0 %279
  %v282 = vmul.f32 %v280, %v24
  %v283 = vadd.f32 %v125, %v282
  %284 = vset.pattern.permute.xlu0 1
  %285 = vperm.xlu0 %284, %v276
  %v286 = vpop.permute.xlu0 %285
  %v288 = vmul.f32 %v286, %v28
  %v289 = vadd.f32 %v283, %v288
  %290 = vset.pattern.permute.xlu0 2
  %291 = vperm.xlu0 %290, %v276
  %v292 = vpop.permute.xlu0 %291
  %v294 = vmul.f32 %v292, %v32
  %v295 = vadd.f32 %v289, %v294
  %296 = vset.pattern.permute.xlu0 3
  %297 = vperm.xlu0 %296, %v276
  %v298 = vpop.permute.xlu0 %297
  %v300 = vmul.f32 %v298, %v36
  %v301 = vadd.f32 %v295, %v300
  %v302 = vmax.f32 %v301, 0.0
  %304 = vset.pattern.permute.xlu0 0
  %305 = vperm.xlu0 %304, %v302
  %v306 = vpop.permute.xlu0 %305
  %v308 = vmul.f32 %v306, %v24
  %v309 = vadd.f32 %v137, %v308
  %310 = vset.pattern.permute.xlu0 1
  %311 = vperm.xlu0 %310, %v302
  %v312 = vpop.permute.xlu0 %311
  %v314 = vmul.f32 %v312, %v28
  %v315 = vadd.f32 %v309, %v314
  %316 = vset.pattern.permute.xlu0 2
  %317 = vperm.xlu0 %316, %v302
  %v318 = vpop.permute.xlu0 %317
  %v320 = vmul.f32 %v318, %v32
  %v321 = vadd.f32 %v315, %v320
  %322 = vset.pattern.permute.xlu0 3
  %323 = vperm.xlu0 %322, %v302
  %v324 = vpop.permute.xlu0 %323
  %v326 = vmul.f32 %v324, %v36
  %v327 = vadd.f32 %v321, %v326
  %v328 = vmax.f32 %v327, 0.0
  %v329 = vlaneseq
  %v330 = vshrl.u32 %v329, 7
  %v331 = vsub.s32 7, %v330
  %v332 = vrot.slane %v11, %v331
  %v333 = vmul.f32 %v328, %v332
  %335 = vrot.lane.b32.xlu0 %v333, 4
  %v336 = vpop.permute.xlu0 %335
  %v338 = vadd.f32 %v332, %v336
  %339 = vrot.lane.b32.xlu0 %v333, 3
  %v340 = vpop.permute.xlu0 %339
  %v342 = vadd.f32 %v338, %v340
  %343 = vrot.lane.b32.xlu0 %v333, 2
  %v344 = vpop.permute.xlu0 %343
  %v346 = vadd.f32 %v342, %v344
  %347 = vrot.lane.b32.xlu0 %v333, 1
  %v348 = vpop.permute.xlu0 %347
  %v350 = vadd.f32 %v346, %v348
  %352 = vset.pattern.permute.xlu0 4
  %353 = vperm.xlu0 %352, %v350
  %v354 = vpop.permute.xlu0 %353
  %356 = vst [vmem:[%s2] sm:$0xff] %v354
  // Predicated region
  $region10: #{many_to_one_rnn.1} parent=0 // pred_check
    _
  $region11: #{many_to_one_rnn.1} parent=0 // pred_check_branch
    %358 = sbr.rel (0) target = $region13
  $region12: #{many_to_one_rnn.1} parent=0 // pred_region
    _
  $region13: #{many_to_one_rnn.1} parent=0 // pred_fallthru
    _
  // Predicated region
  $region14: #{many_to_one_rnn.1} parent=0 // pred_check
    _
  $region15: #{many_to_one_rnn.1} parent=0 // pred_check_branch
    %360 = sbr.rel (0) target = $region17
  $region16: #{many_to_one_rnn.1} parent=0 // pred_region
    _
  $region17: #{many_to_one_rnn.1} parent=0 // pred_fallthru
    _

</llo_original>
